<compile_context>
chip_gen: v7x
topology: tpu7x:2x2x1
jax: 0.10.0
libtpu: 0.0.40
codegen_flags: <defaults>
</compile_context>

<pallas_src>
import jax
import jax.numpy as jnp
from jax.experimental import pallas as pl
from jax.experimental.pallas import tpu as pltpu


# ---------------------------------------------------------------------------
# Primary path: forward(x, *args, **kwargs) -> x.  Zero HBM traffic, no kernel.
# ---------------------------------------------------------------------------
def identity_map(x: jax.Array, *args, **kwargs) -> jax.Array:
    """Pallas-module equivalent of IdentityMap.forward: returns x unchanged."""
    return x


def identity_map_config():
    # Mirrors the PyTorch module's `config` property.
    return {"mm_projector_type": "identity"}


# ---------------------------------------------------------------------------
# Optional copy path: direct HBM -> HBM DMA (no VMEM staging).
# ---------------------------------------------------------------------------
def _dma_copy_full_kernel(x_hbm, o_hbm, sem):
    # Single DMA descriptor covering the whole array: HBM -> HBM.
    cp = pltpu.make_async_copy(x_hbm, o_hbm, sem)
    cp.start()
    cp.wait()


def _make_dma_copy_chunked_kernel(chunk_rows: int):
    # One DMA per grid program, each covering `chunk_rows` of the leading axis.
    # Under dimension_semantics=("parallel",) v7x shards programs across its
    # two TensorCores; on v5e/v6e the programs run back-to-back (each DMA
    # already saturates HBM bandwidth, so the serialization costs ~nothing).
    def kernel(x_hbm, o_hbm, sem):
        i = pl.program_id(0)
        start = pl.multiple_of(i * chunk_rows, chunk_rows)
        cp = pltpu.make_async_copy(
            x_hbm.at[pl.ds(start, chunk_rows)],
            o_hbm.at[pl.ds(start, chunk_rows)],
            sem,
        )
        cp.start()
        cp.wait()

    return kernel


def identity_map_copy(x: jax.Array, *, min_bytes_per_chunk: int = 1 << 20) -> jax.Array:
    """Identity that materializes a fresh output buffer via a Pallas DMA copy.

    Prefer `identity_map` (no-op).  Use this only if the caller must own a
    distinct output array.

    `min_bytes_per_chunk` controls when the copy is split into multiple DMAs
    along the leading axis (2/4/8 chunks) so both v7x TensorCores participate.
    """
    if x.size == 0 or x.ndim == 0:
        # Nothing to DMA-tile; still honor the "distinct buffer" contract.
        return jnp.copy(x)

    itemsize = jnp.dtype(x.dtype).itemsize
    total_bytes = int(x.size) * itemsize
    lead = int(x.shape[0])

    # Pick an even chunk count (>=2, preferably 4-8) when the array is large
    # enough that each chunk stays >= min_bytes_per_chunk and the leading axis
    # divides evenly.  Otherwise a single full-array DMA is optimal.
    max_chunks_by_bytes = max(1, total_bytes // max(1, int(min_bytes_per_chunk)))
    n_chunks = 1
    for c in (8, 4, 2):
        if c <= max_chunks_by_bytes and lead % c == 0:
            n_chunks = c
            break

    if n_chunks == 1:
        return pl.pallas_call(
            _dma_copy_full_kernel,
            out_shape=jax.ShapeDtypeStruct(x.shape, x.dtype),
            in_specs=[pl.BlockSpec(memory_space=pl.ANY)],
            out_specs=pl.BlockSpec(memory_space=pl.ANY),
            scratch_shapes=[pltpu.SemaphoreType.DMA(())],
        )(x)

    chunk_rows = lead // n_chunks
    return pl.pallas_call(
        _make_dma_copy_chunked_kernel(chunk_rows),
        out_shape=jax.ShapeDtypeStruct(x.shape, x.dtype),
        grid=(n_chunks,),
        in_specs=[pl.BlockSpec(memory_space=pl.ANY)],
        out_specs=pl.BlockSpec(memory_space=pl.ANY),
        scratch_shapes=[pltpu.SemaphoreType.DMA(())],
        compiler_params=pltpu.CompilerParams(
            # Lets v7x shard the chunk grid across its 2 TensorCores;
            # harmless on v5e/v6e (1 TC).
            dimension_semantics=("parallel",),
        ),
    )(x)


if __name__ == "__main__":
    key = jax.random.PRNGKey(0)
    # batch=2, seq=8, hidden=32 — a small projector-style token input.
    x = jax.random.normal(key, (2, 8, 32), dtype=jnp.float32)

    # Primary path: pure identity (no kernel launch, no HBM traffic).
    y = identity_map(x)
    jax.block_until_ready(y)
    assert y.shape == x.shape and y.dtype == x.dtype
    assert bool(jnp.all(y == x))

    # Secondary path: distinct output buffer via a single HBM->HBM DMA.
    y_copy = identity_map_copy(x)
    jax.block_until_ready(y_copy)
    assert y_copy.shape == x.shape and y_copy.dtype == x.dtype
    assert bool(jnp.all(y_copy == x))

    # Chunked-DMA path (forced at this small shape to exercise grid > 1).
    y_chunk = identity_map_copy(x, min_bytes_per_chunk=1024)
    jax.block_until_ready(y_chunk)
    assert y_chunk.shape == x.shape and y_chunk.dtype == x.dtype
    assert bool(jnp.all(y_chunk == x))

    assert identity_map_config() == {"mm_projector_type": "identity"}

    print("KERNEL_OK")
</pallas_src>

<mosaic_0001>
module attributes {stable_mosaic.version = 11 : i64} {
  func.func @_dma_copy_full_kernel(%arg0: memref<2x8x32xf32, #tpu.memory_space<any>>, %arg1: memref<2x8x32xf32, #tpu.memory_space<any>>, %arg2: memref<!tpu.dma_semaphore, #tpu.memory_space<semaphore_mem>>) attributes {dimension_semantics = [], scalar_prefetch = 0 : i64, scratch_operands = 1 : i64, tpu.core_type = #tpu.core_type<tc>} {
    tpu.enqueue_dma source(%arg0 : memref<2x8x32xf32, #tpu.memory_space<any>>) target(%arg1 : memref<2x8x32xf32, #tpu.memory_space<any>>) target_semaphore(%arg2 : memref<!tpu.dma_semaphore, #tpu.memory_space<semaphore_mem>>)
    tpu.wait_dma2 semaphore(%arg2 : memref<!tpu.dma_semaphore, #tpu.memory_space<semaphore_mem>>) src(%arg0 : memref<2x8x32xf32, #tpu.memory_space<any>>) dst(%arg1 : memref<2x8x32xf32, #tpu.memory_space<any>>)
    return
  }
}

</mosaic_0001>

<llo_original>
// kernel: tpu_custom_call.1
$region0: #{tpu_custom_call.1}
  #allocation0 [shape = 'u32[]', space=smem, size = 0x4, offset = 0x4, fixed_abs, tag = 'smem constant byte address 0x4 - core index']
  #allocation1 [shape = 'u32[144,128]{1,0:T(1,128)}', space=vmem, size = 0x12000, scoped, tag = 'internal scratch']
  #allocation2 [shape = 's32[1]{0}', space=sflag, size = 0x4, scoped, tag = 'scratch operand']
  #allocation3 [shape = 's32[]', space=sflag, size = 0x4, offset = 0, fixed_abs, tag = 'sflag constant byte address 0x0 - dummy sync flag']
  #allocation4 [shape = 'u32[0]{0}', space=smem, size = 0, offset = 0, fixed_abs, tag = 'smem constant byte address 0x0 - null']
  %s0 = inlined_call_operand.hbm [shape: f32[2,8,32], index: 0, kind: input, shape index: {}]
  %s1 = inlined_call_operand.hbm [shape: f32[2,8,32], index: 1, kind: output, shape index: {}]
  %s2 = sld [smem:[#allocation0]]
  $region2: #{tpu_custom_call.1} parent=0
    _
  %s4 = ssub.s32 1, %s2
  %s5 = scalar_select 0, %s4, %s2
  %s7 = sshll.u32 1, 14
  %s8 = sxor.u32 4294967295, %s7
  %s11 = sshll.u32 3, 24
  %s12 = sxor.u32 4294967295, %s11
  %s13 = sand.u32 0, %s12
  %s15 = sor.u32 %s13, 0
  %18 = dma.general %s0, 256, %s1, [#allocation2], [#allocation3], [#allocation4], %s15, 0
  %s19 = smul.u32 2, 8
  %s20 = smul.u32 %s19, 1
  %s21 = sshll.u32 %s20, 4
  %22 = dma.done [#allocation2], %s21
  %23 = vsyncmov [#allocation2]
  %s24 = vpop.sfrf %23
  %p25 = scmp.eq.s32.totalorder %s24, 0
  %p26 = pneg %p25
  %28 = shalt.err (%p26)

</llo_original>
